<compile_context>
chip_gen: v7x
topology: tpu7x:2x2x1
jax: 0.10.0
libtpu: 0.0.40
codegen_flags: <defaults>
</compile_context>

<pallas_src>
import jax
import jax.numpy as jnp
from jax.experimental import pallas as pl
from jax.experimental.pallas import tpu as pltpu

_LANE = 128
_TR_MAX = 4096  # packed rows per tile (= 128K batch rows); ~8 MiB double-buffered VMEM


def _packed_linear_kernel(x_ref, p_ref, b_ref, o_ref):
    # x_ref: (TR, 128)   p_ref: (128, 96)   b_ref: (1, 96)   o_ref: (TR, 96)
    # Single MXU matmul per tile (block-diagonal packed weight) + bias add.
    acc = jnp.dot(x_ref[...], p_ref[...], preferred_element_type=jnp.float32)
    o_ref[...] = (acc + b_ref[...]).astype(o_ref.dtype)


def mynet1_forward(x, weight, bias):
    """x: (B, 4) f32; weight: (3, 4) f32 (torch layout); bias: (3,) f32."""
    B, in_f = x.shape
    out_f = weight.shape[0]
    pack = _LANE // in_f                      # 32 batch rows per packed row
    pin, pout = pack * in_f, pack * out_f     # 128, 96

    # Pad batch to a multiple of `pack` only when needed (B % 32 == 0 → free).
    b_pad = pl.cdiv(B, pack) * pack
    if b_pad != B:
        x = jnp.pad(x, ((0, b_pad - B), (0, 0)))
    r_total = b_pad // pack
    # Free contiguous reshape (bitcast): 32 batch rows per 128-lane packed row.
    x_packed = x.reshape(r_total, pin)

    # Block-diagonal packed weight: P[in_f*b + f, out_f*b + j] = W[j, f].
    p_mat = jnp.einsum(
        "bc,fj->bfcj", jnp.eye(pack, dtype=x.dtype), weight.T
    ).reshape(pin, pout)
    # Lane-periodic bias: bias_packed[0, out_f*b + j] = bias[j].
    bias_packed = jnp.tile(bias, pack).reshape(1, pout).astype(x.dtype)

    # Tile selection: huge tiles to amortize per-step overhead; >= 2 tiles
    # when possible so the "parallel" axis feeds both v7x TensorCores.
    if r_total > _TR_MAX:
        tr = _TR_MAX
    elif r_total > 8:
        tr = ((r_total + 15) // 16) * 8       # ~half, multiple of 8 sublanes
    else:
        tr = r_total                          # single tiny tile (== full dim)
    num_tiles = pl.cdiv(r_total, tr)

    cost = pl.CostEstimate(
        flops=2 * r_total * pin * pout,
        transcendentals=0,
        bytes_accessed=4 * (r_total * pin + pin * pout + pout + r_total * pout),
    )

    out_packed = pl.pallas_call(
        _packed_linear_kernel,
        out_shape=jax.ShapeDtypeStruct((r_total, pout), x.dtype),
        grid=(num_tiles,),
        in_specs=[
            pl.BlockSpec((tr, pin), lambda i: (i, 0)),    # x tile, pipelined
            pl.BlockSpec((pin, pout), lambda i: (0, 0)),  # packed weight, resident
            pl.BlockSpec((1, pout), lambda i: (0, 0)),    # packed bias, resident
        ],
        out_specs=pl.BlockSpec((tr, pout), lambda i: (i, 0)),
        compiler_params=pltpu.CompilerParams(
            dimension_semantics=("parallel",)  # megacore sharding on v7x
        ),
        cost_estimate=cost,
    )(x_packed, p_mat, bias_packed)

    # Free contiguous reshape back to torch layout; slice only if we padded.
    out = out_packed.reshape(b_pad, out_f)
    return out if b_pad == B else out[:B]


if __name__ == "__main__":
    key = jax.random.PRNGKey(0)
    kx, kw, kb = jax.random.split(key, 3)

    B, IN, OUT = 8, 4, 3
    x = jax.random.normal(kx, (B, IN), dtype=jnp.float32)

    # Deterministic parameter init mimicking torch's default Linear init
    # (uniform in [-1/sqrt(in_features), 1/sqrt(in_features)]).
    bound = 1.0 / jnp.sqrt(jnp.float32(IN))
    weight = jax.random.uniform(kw, (OUT, IN), jnp.float32, -bound, bound)
    bias = jax.random.uniform(kb, (OUT,), jnp.float32, -bound, bound)

    out = mynet1_forward(x, weight, bias)
    jax.block_until_ready(out)

    # Sanity check against plain JAX reference.
    ref = x @ weight.T + bias
    assert out.shape == (B, OUT)
    assert jnp.allclose(out, ref, atol=1e-5, rtol=1e-5)
    print("KERNEL_OK")
</pallas_src>

<mosaic_0001>
module attributes {stable_mosaic.version = 11 : i64} {
  func.func @_packed_linear_kernel(%arg0: i32, %arg1: memref<1x128xf32, #tpu.memory_space<vmem>>, %arg2: memref<128x96xf32, #tpu.memory_space<vmem>>, %arg3: memref<1x96xf32, #tpu.memory_space<vmem>>, %arg4: memref<1x96xf32, #tpu.memory_space<vmem>>) attributes {dimension_semantics = [#tpu.dimension_semantics<parallel>], iteration_bounds = array<i64: 1>, scalar_prefetch = 0 : i64, scratch_operands = 0 : i64, tpu.core_type = #tpu.core_type<tc>, window_params = [{transform_indices = @transform_0, window_bounds = array<i64: 1, 128>}, {pipeline_mode = #tpu.pipeline_mode<synchronous>, transform_indices = @transform_1, window_bounds = array<i64: 128, 96>}, {pipeline_mode = #tpu.pipeline_mode<synchronous>, transform_indices = @transform_2, window_bounds = array<i64: 1, 96>}, {transform_indices = @transform_3, window_bounds = array<i64: 1, 96>}]} {
    %c0 = arith.constant 0 : index
    %c0_0 = arith.constant 0 : index
    %0 = vector.load %arg1[%c0, %c0_0] : memref<1x128xf32, #tpu.memory_space<vmem>>, vector<1x128xf32>
    %c0_1 = arith.constant 0 : index
    %c0_2 = arith.constant 0 : index
    %1 = vector.load %arg2[%c0_1, %c0_2] : memref<128x96xf32, #tpu.memory_space<vmem>>, vector<128x96xf32>
    %cst = arith.constant dense<0.000000e+00> : vector<1x96xf32>
    %2 = tpu.matmul %0, %1, %cst {dimension_numbers = #tpu.dot_dimension_numbers<[1], [0], [0], [1], [0, 0, 1, 1], [], []>} : vector<1x128xf32>, vector<128x96xf32>, vector<1x96xf32> -> vector<1x96xf32>
    %c0_3 = arith.constant 0 : index
    %c0_4 = arith.constant 0 : index
    %3 = vector.load %arg3[%c0_3, %c0_4] : memref<1x96xf32, #tpu.memory_space<vmem>>, vector<1x96xf32>
    %4 = arith.addf %2, %3 : vector<1x96xf32>
    %c0_5 = arith.constant 0 : index
    %c0_6 = arith.constant 0 : index
    %5 = vector.load %arg4[%c0_5, %c0_6] : memref<1x96xf32, #tpu.memory_space<vmem>>, vector<1x96xf32>
    tpu.vector_store %arg4[%c0_5, %c0_6], %4 {strides = array<i32>} : memref<1x96xf32, #tpu.memory_space<vmem>>, vector<1x96xf32>,
    return
  }
  func.func @transform_0(%arg0: i32) -> (i32, i32) {
    %c0_i32 = arith.constant 0 : i32
    %c0_i32_0 = arith.constant 0 : i32
    return %arg0, %c0_i32 : i32, i32
  }
  func.func @transform_1(%arg0: i32) -> (i32, i32) {
    %c0_i32 = arith.constant 0 : i32
    %c0_i32_0 = arith.constant 0 : i32
    %c0_i32_1 = arith.constant 0 : i32
    return %c0_i32, %c0_i32_0 : i32, i32
  }
  func.func @transform_2(%arg0: i32) -> (i32, i32) {
    %c0_i32 = arith.constant 0 : i32
    %c0_i32_0 = arith.constant 0 : i32
    %c0_i32_1 = arith.constant 0 : i32
    return %c0_i32, %c0_i32_0 : i32, i32
  }
  func.func @transform_3(%arg0: i32) -> (i32, i32) {
    %c0_i32 = arith.constant 0 : i32
    %c0_i32_0 = arith.constant 0 : i32
    return %arg0, %c0_i32 : i32, i32
  }
}

</mosaic_0001>

<llo_original>
// kernel: tpu_custom_call.1
$region0: #{tpu_custom_call.1}
  #allocation0 [shape = 'u32[]', space=smem, size = 0x4, offset = 0x4, fixed_abs, tag = 'smem constant byte address 0x4 - core index']
  #allocation1 [shape = 'u32[144,128]{1,0:T(1,128)}', space=vmem, size = 0x12000, scoped, tag = 'internal scratch']
  %s0 = inlined_call_operand.vmem [shape: f32[1,128], index: 0, kind: input, shape index: {}]
  %s1 = inlined_call_operand.vmem [shape: f32[128,96], index: 1, kind: input, shape index: {}]
  %s2 = inlined_call_operand.vmem [shape: f32[1,96], index: 2, kind: input, shape index: {}]
  %s3 = inlined_call_operand.hbm [shape: f32[1,96], index: 3, kind: output, shape index: {}]
  %s4 = sld [smem:[#allocation0]]
  $region22: #{tpu_custom_call.1} parent=0
    _
  %s6 = ssub.s32 1, %s4
  %s7 = scalar_select 0, %s6, %s4
  $region1: #{tpu_custom_call.1} parent=0
    #allocation2 [shape = 'u8[512]{0}', space=vmem, size = 0x400, scoped, tag = 'output window, operand 0, single buffered']
    #allocation3 [shape = 's32[1]{0}', space=sflag, size = 0x4, scoped, tag = 'scoped memory for tpu_custom_call.1']
    %8 = vsyncpa [#allocation3], 0
    // Predicated region
    $region2: #{tpu_custom_call.1} parent=1 // pred_check
      _
    $region3: #{tpu_custom_call.1} parent=1 // pred_check_branch
      %10 = sbr.rel (0) target = $region5
    $region4: #{tpu_custom_call.1} parent=1 // pred_region
      _
    $region5: #{tpu_custom_call.1} parent=1 // pred_fallthru
      _
    // Predicated region
    $region6: #{tpu_custom_call.1} parent=1 // pred_check
      _
    $region7: #{tpu_custom_call.1} parent=1 // pred_check_branch
      %12 = sbr.rel (0) target = $region9
    $region8: #{tpu_custom_call.1} parent=1 // pred_region
      _
    $region9: #{tpu_custom_call.1} parent=1 // pred_fallthru
      _
    // Predicated region
    $region10: #{tpu_custom_call.1} parent=1 // pred_check
      _
    $region11: #{tpu_custom_call.1} parent=1 // pred_check_branch
      %14 = sbr.rel (0) target = $region13
    $region12: #{tpu_custom_call.1} parent=1 // pred_region
      _
    $region13: #{tpu_custom_call.1} parent=1 // pred_fallthru
      _
    %v15 = vld [vmem:[%s0] sm:$0x1]
    %v16 = vld [vmem:[%s1] sm:$0xff]
    %v17 = vld [vmem:[%s1 + $0x8] sm:$0xff]
    %v18 = vld [vmem:[%s1 + $0x10] sm:$0xff]
    %v19 = vld [vmem:[%s1 + $0x18] sm:$0xff]
    %v20 = vld [vmem:[%s1 + $0x20] sm:$0xff]
    %v21 = vld [vmem:[%s1 + $0x28] sm:$0xff]
    %v22 = vld [vmem:[%s1 + $0x30] sm:$0xff]
    %v23 = vld [vmem:[%s1 + $0x38] sm:$0xff]
    %v24 = vld [vmem:[%s1 + $0x40] sm:$0xff]
    %v25 = vld [vmem:[%s1 + $0x48] sm:$0xff]
    %v26 = vld [vmem:[%s1 + $0x50] sm:$0xff]
    %v27 = vld [vmem:[%s1 + $0x58] sm:$0xff]
    %v28 = vld [vmem:[%s1 + $0x60] sm:$0xff]
    %v29 = vld [vmem:[%s1 + $0x68] sm:$0xff]
    %v30 = vld [vmem:[%s1 + $0x70] sm:$0xff]
    %v31 = vld [vmem:[%s1 + $0x78] sm:$0xff]
    %v32 = vld [vmem:[%s2] sm:$0x1]
    %33 = vmatprep.subr.mxu0 0.0
    %34 = vmatpush1.msra.mxu0 %v16
    %35 = vmatprep.subr.mxu0 0.0
    %36 = vmatpush1.msra.mxu0 %v17
    %37 = vmatprep.subr.mxu0 0.0
    %38 = vmatpush1.msra.mxu0 %v18
    %39 = vmatprep.subr.mxu0 0.0
    %40 = vmatpush1.msra.mxu0 %v19
    %41 = vmatprep.subr.mxu0 0.0
    %42 = vmatpush1.msra.mxu0 %v20
    %43 = vmatprep.subr.mxu0 0.0
    %44 = vmatpush1.msra.mxu0 %v21
    %45 = vmatprep.subr.mxu0 0.0
    %46 = vmatpush1.msra.mxu0 %v22
    %47 = vmatprep.subr.mxu0 0.0
    %48 = vmatpush1.msra.mxu0 %v23
    %49 = vmatprep.subr.mxu0 0.0
    %50 = vmatpush1.msra.mxu0 %v24
    %51 = vmatprep.subr.mxu0 0.0
    %52 = vmatpush1.msra.mxu0 %v25
    %53 = vmatprep.subr.mxu0 0.0
    %54 = vmatpush1.msra.mxu0 %v26
    %55 = vmatprep.subr.mxu0 0.0
    %56 = vmatpush1.msra.mxu0 %v27
    %57 = vmatprep.subr.mxu0 0.0
    %58 = vmatpush1.msra.mxu0 %v28
    %59 = vmatprep.subr.mxu0 0.0
    %60 = vmatpush1.msra.mxu0 %v29
    %61 = vmatprep.subr.mxu0 0.0
    %62 = vmatpush1.msra.mxu0 %v30
    %63 = vmatprep.subr.mxu0 0.0
    %64 = vmatpush1.msra.mxu0 %v31
    %65 = vmatprep.subr.mxu0 0.0
    %66 = vmatpush1.msra.mxu0 0.0
    %67 = vmatprep.subr.mxu0 0.0
    %68 = vmatpush1.msra.mxu0 0.0
    %69 = vmatprep.subr.mxu0 0.0
    %70 = vmatpush1.msra.mxu0 0.0
    %71 = vmatprep.subr.mxu0 0.0
    %72 = vmatpush1.msra.mxu0 0.0
    %73 = vmatprep.subr.mxu0 0.0
    %74 = vmatpush1.msra.mxu0 0.0
    %75 = vmatprep.subr.mxu0 0.0
    %76 = vmatpush1.msra.mxu0 0.0
    %77 = vmatprep.subr.mxu0 0.0
    %78 = vmatpush1.msra.mxu0 0.0
    %79 = vmatprep.subr.mxu0 0.0
    %80 = vmatpush1.msra.mxu0 0.0
    %81 = vmatprep.subr.mxu0 0.0
    %82 = vmatpush1.msra.mxu0 0.0
    %83 = vmatprep.subr.mxu0 0.0
    %84 = vmatpush1.msra.mxu0 0.0
    %85 = vmatprep.subr.mxu0 0.0
    %86 = vmatpush1.msra.mxu0 0.0
    %87 = vmatprep.subr.mxu0 0.0
    %88 = vmatpush1.msra.mxu0 0.0
    %89 = vmatprep.subr.mxu0 0.0
    %90 = vmatpush1.msra.mxu0 0.0
    %91 = vmatprep.subr.mxu0 0.0
    %92 = vmatpush1.msra.mxu0 0.0
    %93 = vmatprep.subr.mxu0 0.0
    %94 = vmatpush1.msra.mxu0 0.0
    %95 = vmatprep.subr.mxu0 0.0
    %96 = vmatpush1.msra.mxu0 0.0
    %97 = vmatprep.mubr.f32.mxu0 0.0
    %98 = vmatmul.mubr.f32.gmra.mrb[0].mxu0 %v15
    %v99 = vpop.f32.mrb[0].mxu0
    %v100 = vadd.f32 %v32, %v99
    %v101 = vpop.f32.mrb[0].mxu0
    %102 = vdwg.mxu0
    %vm103 = vcmask 778240
    %104 = vst.msk [vmem:[#allocation2] sm:$0x1] %vm103, %v100
    // Predicated region
    $region14: #{tpu_custom_call.1} parent=1 // pred_check
      _
    $region15: #{tpu_custom_call.1} parent=1 // pred_check_branch
      %106 = sbr.rel (0) target = $region17
    $region16: #{tpu_custom_call.1} parent=1 // pred_region
      %s108 = ssub.s32 16, 16
      %109 = vsyncadd [#allocation3], %s108
      %s111 = sshll.u32 [#allocation2], 4
      %s112 = int_to_ptr.vmem [resolvable:$true] %s111
      %114 = dma.vmem_to_hbm [thread:$0]  %s112, 16, %s3, [#allocation3]
    $region17: #{tpu_custom_call.1} parent=1 // pred_fallthru
      _
    // Predicated region
    $region18: #{tpu_custom_call.1} parent=1 // pred_check
      _
    $region19: #{tpu_custom_call.1} parent=1 // pred_check_branch
      %116 = sbr.rel (0) target = $region21
    $region20: #{tpu_custom_call.1} parent=1 // pred_region
      %117 = dma.done [#allocation3], 16
    $region21: #{tpu_custom_call.1} parent=1 // pred_fallthru
      _
    %118 = vsyncpa [#allocation3], 1

</llo_original>
